<compile_context>
chip_gen: v7x
topology: tpu7x:2x2x1
jax: 0.10.0
libtpu: 0.0.40
codegen_flags: <defaults>
</compile_context>

<pallas_src>
import math
from functools import lru_cache

import jax
import jax.numpy as jnp
from jax.experimental import pallas as pl
from jax.experimental.pallas import tpu as pltpu

EPS = 1e-5
_FUSE_MAX_F32_BYTES = 4 * 1024 * 1024   # fuse BN stats+apply when packed f32 x is <= this


@lru_cache(maxsize=1)
def _hw_defaults():
    """Returns (target_block_bytes, vmem_limit_bytes), tuned per TPU generation."""
    kind = ""
    try:
        kind = jax.devices()[0].device_kind.lower()
    except Exception:
        pass
    if "v5" in kind or "v6" in kind:            # 128 MiB physical VMEM parts
        return 8 * 1024 * 1024, 64 * 1024 * 1024
    # v7x (64 MiB VMEM) and unknown parts: stay conservative.
    return 5 * 1024 * 1024, 48 * 1024 * 1024


def _lane_pack_factor(d, rows):
    """Fold r = 128//d rows into the lane axis when it is exact (D | 128 and r | rows)."""
    if d < 128 and 128 % d == 0 and rows % (128 // d) == 0:
        return 128 // d
    return 1


def _sum_lane_groups(v, group_width, total_width):
    """Make every `group_width`-wide lane group hold the sum over all groups.

    total_width // group_width is a power of two when packing is active (both divide 128),
    so log2(r) lane rotations (XLU; separate slot from the VPU) + adds suffice.
    """
    axis = v.ndim - 1
    shift = group_width
    while shift < total_width:
        v = v + pltpu.roll(v, shift, axis)
        shift *= 2
    return v


# ----------------------------- batch norm ('batch') -----------------------------

def _make_bn_stats_kernel(n_total, n_rows, tile_rows, dp, d_orig, needs_mask):
    """Pass 1: per-lane sum / sum-of-squares over packed row tiles.
    Finalize emits scale = rstd*gamma and shift = beta - mean*scale."""
    inv_n = 1.0 / n_total
    groups = tile_rows // 8 if tile_rows % 8 == 0 else None

    def kernel(x_ref, g_ref, b_ref, scale_ref, shift_ref, sum_ref, sq_ref):
        i = pl.program_id(0)
        last = pl.num_programs(0) - 1

        @pl.when(i == 0)
        def _init():
            sum_ref[...] = jnp.zeros_like(sum_ref)
            sq_ref[...] = jnp.zeros_like(sq_ref)

        def accumulate(xf):
            if groups is not None:
                # (tile_rows, dp) -> (groups, 8, dp): leading-axis reduce is pure VPU vreg
                # adds; the cross-sublane XLU reduce happens only once, in the finalize.
                xg = xf.reshape(groups, 8, dp)
                sum_ref[...] += jnp.sum(xg, axis=0)
                sq_ref[...] += jnp.sum(xg * xg, axis=0)
            else:
                sum_ref[...] += jnp.sum(xf, axis=0, keepdims=True)
                sq_ref[...] += jnp.sum(xf * xf, axis=0, keepdims=True)

        if needs_mask:
            # Keep the compare+select off the hot path: only the ragged last tile masks.
            @pl.when(i != last)
            def _full():
                accumulate(x_ref[...].astype(jnp.float32))

            @pl.when(i == last)
            def _ragged():
                row = i * tile_rows + jax.lax.broadcasted_iota(jnp.int32, (tile_rows, 1), 0)
                accumulate(jnp.where(row < n_rows, x_ref[...].astype(jnp.float32), 0.0))
        else:
            accumulate(x_ref[...].astype(jnp.float32))

        @pl.when(i == last)
        def _finalize():
            s = jnp.sum(sum_ref[...], axis=0, keepdims=True)        # single sublane reduce
            ss = jnp.sum(sq_ref[...], axis=0, keepdims=True)
            s = _sum_lane_groups(s, d_orig, dp)                     # combine packed lane groups
            ss = _sum_lane_groups(ss, d_orig, dp)
            mean = s * inv_n
            var = jnp.maximum(ss * inv_n - mean * mean, 0.0)
            scale = jax.lax.rsqrt(var + EPS) * g_ref[...].astype(jnp.float32)
            scale_ref[...] = scale
            shift_ref[...] = b_ref[...].astype(jnp.float32) - mean * scale

    return kernel


def _make_bn_apply_kernel(low_precision):
    """Pass 2: y = x * scale + shift — a pure FMA stream over lane-dense tiles."""
    def kernel(x_ref, scale_ref, shift_ref, o_ref):
        if low_precision:     # bf16 inputs (v6e/v7x have bf16 VALU): halve element ops / vregs
            o_ref[...] = (x_ref[...] * scale_ref[...].astype(o_ref.dtype)
                          + shift_ref[...].astype(o_ref.dtype)).astype(o_ref.dtype)
        else:
            o_ref[...] = (x_ref[...].astype(jnp.float32) * scale_ref[...]
                          + shift_ref[...]).astype(o_ref.dtype)
    return kernel


def _make_bn_fused_kernel(n_total, np_rows, dp, d_orig, low_precision):
    """Single-call BN: x stays resident in VMEM; stats then normalize in one pass."""
    inv_n = 1.0 / n_total
    groups = np_rows // 8 if np_rows % 8 == 0 else None

    def kernel(x_ref, g_ref, b_ref, o_ref):
        xf = x_ref[...].astype(jnp.float32)                          # (Np, Dp)
        if groups is not None:
            xg = xf.reshape(groups, 8, dp)
            s = jnp.sum(jnp.sum(xg, axis=0), axis=0, keepdims=True)  # VPU adds + one XLU reduce
            ss = jnp.sum(jnp.sum(xg * xg, axis=0), axis=0, keepdims=True)
        else:
            s = jnp.sum(xf, axis=0, keepdims=True)
            ss = jnp.sum(xf * xf, axis=0, keepdims=True)
        s = _sum_lane_groups(s, d_orig, dp)
        ss = _sum_lane_groups(ss, d_orig, dp)
        mean = s * inv_n
        var = jnp.maximum(ss * inv_n - mean * mean, 0.0)
        scale = jax.lax.rsqrt(var + EPS) * g_ref[...].astype(jnp.float32)
        shift = b_ref[...].astype(jnp.float32) - mean * scale
        if low_precision:
            o_ref[...] = (x_ref[...] * scale.astype(o_ref.dtype)
                          + shift.astype(o_ref.dtype)).astype(o_ref.dtype)
        else:
            o_ref[...] = (xf * scale + shift).astype(o_ref.dtype)

    return kernel


def _batch_norm_forward(x, gamma, beta, target_block_bytes=None, allow_fused=True):
    B, S, D = x.shape
    N = B * S
    tbb_default, vmem_limit = _hw_defaults()
    tbb = tbb_default if target_block_bytes is None else target_block_bytes

    # Lane-dense packing: (N, D) -> (N/r, r*D), gamma/beta tiled r times.
    r = _lane_pack_factor(D, N)
    Np, Dp = N // r, D * r
    xp = x.reshape(Np, Dp)
    gp = (jnp.tile(gamma, (r,)) if r > 1 else gamma).reshape(1, Dp)
    bp = (jnp.tile(beta, (r,)) if r > 1 else beta).reshape(1, Dp)
    low_prec = (x.dtype == jnp.bfloat16)

    # Fused single-call path: cuts HBM traffic from 3x to 2x N*D and removes one launch.
    if allow_fused and Np * Dp * 4 <= _FUSE_MAX_F32_BYTES:
        out = pl.pallas_call(
            _make_bn_fused_kernel(N, Np, Dp, D, low_prec),
            out_shape=jax.ShapeDtypeStruct((Np, Dp), x.dtype),
            grid=(1,),
            in_specs=[pl.BlockSpec((Np, Dp), lambda i: (0, 0)),
                      pl.BlockSpec((1, Dp), lambda i: (0, 0)),
                      pl.BlockSpec((1, Dp), lambda i: (0, 0))],
            out_specs=pl.BlockSpec((Np, Dp), lambda i: (0, 0)),
            compiler_params=pltpu.CompilerParams(
                dimension_semantics=("arbitrary",),
                vmem_limit_bytes=vmem_limit),
        )(xp, gp, bp)
        return out.reshape(B, S, D)

    # Two-pass fallback for large tensors.
    tm = max(8, (tbb // (Dp * 4)) // 8 * 8)
    TM = min(Np, tm)                      # if TM == Np it equals the full dim (always legal)
    n_tiles = pl.cdiv(Np, TM)
    needs_mask = (Np % TM) != 0
    sub = 8 if TM % 8 == 0 else 1

    scale, shift = pl.pallas_call(
        _make_bn_stats_kernel(N, Np, TM, Dp, D, needs_mask),
        out_shape=(jax.ShapeDtypeStruct((1, Dp), jnp.float32),
                   jax.ShapeDtypeStruct((1, Dp), jnp.float32)),
        grid=(n_tiles,),
        in_specs=[pl.BlockSpec((TM, Dp), lambda i: (i, 0)),
                  pl.BlockSpec((1, Dp), lambda i: (0, 0)),
                  pl.BlockSpec((1, Dp), lambda i: (0, 0))],
        out_specs=(pl.BlockSpec((1, Dp), lambda i: (0, 0)),
                   pl.BlockSpec((1, Dp), lambda i: (0, 0))),
        scratch_shapes=[pltpu.VMEM((sub, Dp), jnp.float32),
                        pltpu.VMEM((sub, Dp), jnp.float32)],
        compiler_params=pltpu.CompilerParams(
            dimension_semantics=("arbitrary",),      # accumulator carries across row tiles
            vmem_limit_bytes=vmem_limit),
    )(xp, gp, bp)

    out = pl.pallas_call(
        _make_bn_apply_kernel(low_prec),
        out_shape=jax.ShapeDtypeStruct((Np, Dp), x.dtype),
        grid=(n_tiles,),
        in_specs=[pl.BlockSpec((TM, Dp), lambda i: (i, 0)),
                  pl.BlockSpec((1, Dp), lambda i: (0, 0)),
                  pl.BlockSpec((1, Dp), lambda i: (0, 0))],
        out_specs=pl.BlockSpec((TM, Dp), lambda i: (i, 0)),
        compiler_params=pltpu.CompilerParams(
            dimension_semantics=("parallel",),       # independent row tiles
            vmem_limit_bytes=vmem_limit),
    )(xp, scale, shift)
    return out.reshape(B, S, D)


# --------------------------- instance norm ('instance') ---------------------------

def _make_instance_kernel(seq_len, sp, dp, d_orig, low_precision):
    inv_s = 1.0 / seq_len
    groups = sp // 8 if sp % 8 == 0 else None

    def kernel(x_ref, g_ref, b_ref, o_ref):
        xf = x_ref[...].astype(jnp.float32)                           # (Bt, Sp, Dp)
        if groups is not None:
            # (Bt, Sp, Dp) -> (Bt, Sp/8, 8, Dp): VPU vreg adds, one XLU sublane reduce.
            xg = xf.reshape(xf.shape[0], groups, 8, dp)
            s = jnp.sum(jnp.sum(xg, axis=1), axis=1, keepdims=True)   # (Bt, 1, Dp)
            ss = jnp.sum(jnp.sum(xg * xg, axis=1), axis=1, keepdims=True)
        else:
            s = jnp.sum(xf, axis=1, keepdims=True)
            ss = jnp.sum(xf * xf, axis=1, keepdims=True)
        s = _sum_lane_groups(s, d_orig, dp)                           # combine packed lane groups
        ss = _sum_lane_groups(ss, d_orig, dp)
        mean = s * inv_s
        var = jnp.maximum(ss * inv_s - mean * mean, 0.0)
        scale = jax.lax.rsqrt(var + EPS) * g_ref[...].astype(jnp.float32)
        shift = b_ref[...].astype(jnp.float32) - mean * scale
        if low_precision:
            o_ref[...] = (x_ref[...] * scale.astype(o_ref.dtype)
                          + shift.astype(o_ref.dtype)).astype(o_ref.dtype)
        else:
            o_ref[...] = (xf * scale + shift).astype(o_ref.dtype)

    return kernel


def _instance_norm_forward(x, gamma, beta, target_block_bytes=None):
    B, S, D = x.shape
    tbb_default, vmem_limit = _hw_defaults()
    tbb = tbb_default if target_block_bytes is None else target_block_bytes

    # Lane-dense packing: (B, S, D) -> (B, S/r, r*D).
    r = _lane_pack_factor(D, S)
    Sp, Dp = S // r, D * r
    xp = x.reshape(B, Sp, Dp)
    gp = (jnp.tile(gamma, (r,)) if r > 1 else gamma).reshape(1, 1, Dp)
    bp = (jnp.tile(beta, (r,)) if r > 1 else beta).reshape(1, 1, Dp)
    low_prec = (x.dtype == jnp.bfloat16)

    per_elem = Sp * Dp * x.dtype.itemsize
    Bt = max(1, min(B, tbb // max(per_elem, 1)))      # many batch elems per grid step
    n_tiles = pl.cdiv(B, Bt)

    out = pl.pallas_call(
        _make_instance_kernel(S, Sp, Dp, D, low_prec),
        out_shape=jax.ShapeDtypeStruct((B, Sp, Dp), x.dtype),
        grid=(n_tiles,),
        in_specs=[pl.BlockSpec((Bt, Sp, Dp), lambda i: (i, 0, 0)),
                  pl.BlockSpec((1, 1, Dp), lambda i: (0, 0, 0)),
                  pl.BlockSpec((1, 1, Dp), lambda i: (0, 0, 0))],
        out_specs=pl.BlockSpec((Bt, Sp, Dp), lambda i: (i, 0, 0)),
        compiler_params=pltpu.CompilerParams(
            dimension_semantics=("parallel",),
            vmem_limit_bytes=vmem_limit),
    )(xp, gp, bp)
    return out.reshape(B, S, D)


# ----------------------------------- wrapper -----------------------------------

def normalization_forward(x, gamma, beta, normalization="batch",
                          target_block_bytes=None, allow_fused=True):
    """x: (B, S, D); gamma, beta: (D,). Returns (B, S, D). Training-mode statistics."""
    if normalization == "batch":
        return _batch_norm_forward(x, gamma, beta, target_block_bytes, allow_fused)
    elif normalization == "instance":
        return _instance_norm_forward(x, gamma, beta, target_block_bytes)
    else:
        # Unknown normalizer -> identity (matches `self.normalizer is None` branch).
        return x


if __name__ == "__main__":
    def _ref_batch(x, gamma, beta):
        B, S, D = x.shape
        xf = x.reshape(-1, D).astype(jnp.float32)
        mean = xf.mean(0, keepdims=True)
        var = ((xf - mean) ** 2).mean(0, keepdims=True)
        y = (xf - mean) / jnp.sqrt(var + EPS) * gamma + beta
        return y.reshape(B, S, D)

    def _ref_instance(x, gamma, beta):
        xf = x.astype(jnp.float32)
        mean = xf.mean(1, keepdims=True)
        var = ((xf - mean) ** 2).mean(1, keepdims=True)
        return (xf - mean) / jnp.sqrt(var + EPS) * gamma + beta

    key = jax.random.PRNGKey(0)
    kx, kg, kb, kx2, kx3 = jax.random.split(key, 5)

    # Small shapes consistent with the module: (batch=2, seq=8, embed_dim=32).
    B, S, D = 2, 8, 32
    x = jax.random.normal(kx, (B, S, D), dtype=jnp.float32)
    stdv = 1.0 / math.sqrt(D)   # mimics init_parameters(): U(-1/sqrt(D), 1/sqrt(D))
    gamma = jax.random.uniform(kg, (D,), jnp.float32, minval=-stdv, maxval=stdv)
    beta = jax.random.uniform(kb, (D,), jnp.float32, minval=-stdv, maxval=stdv)

    y_bn = normalization_forward(x, gamma, beta, "batch")        # fused, lane-packed path
    y_in = normalization_forward(x, gamma, beta, "instance")     # single-tile, lane-packed path
    jax.block_until_ready((y_bn, y_in))
    assert jnp.allclose(y_bn, _ref_batch(x, gamma, beta), atol=1e-4), "batch norm mismatch"
    assert jnp.allclose(y_in, _ref_instance(x, gamma, beta), atol=1e-4), "instance norm mismatch"

    # Multi-tile / ragged-tile paths: two-pass BN with masked last tile; ragged instance tile.
    B2, S2, D2 = 3, 40, 32
    x2 = jax.random.normal(kx2, (B2, S2, D2), dtype=jnp.float32)
    y2_bn = normalization_forward(x2, gamma, beta, "batch",
                                  target_block_bytes=16 * 128 * 4, allow_fused=False)
    y2_in = normalization_forward(x2, gamma, beta, "instance",
                                  target_block_bytes=2 * (S2 // 4) * 128 * 4)
    jax.block_until_ready((y2_bn, y2_in))
    assert jnp.allclose(y2_bn, _ref_batch(x2, gamma, beta), atol=1e-4), "tiled batch norm mismatch"
    assert jnp.allclose(y2_in, _ref_instance(x2, gamma, beta), atol=1e-4), "tiled instance norm mismatch"

    # bf16: low-precision apply path, plus a ragged instance batch tile (B=3, Bt=2).
    x3 = jax.random.normal(kx3, (3, 8, 32), dtype=jnp.bfloat16)
    y3_bn = normalization_forward(x3, gamma, beta, "batch")
    y3_in = normalization_forward(x3, gamma, beta, "instance",
                                  target_block_bytes=2 * 2 * 128 * 2)
    jax.block_until_ready((y3_bn, y3_in))
    assert jnp.allclose(y3_bn.astype(jnp.float32), _ref_batch(x3, gamma, beta),
                        atol=5e-2), "bf16 batch norm mismatch"
    assert jnp.allclose(y3_in.astype(jnp.float32), _ref_instance(x3, gamma, beta),
                        atol=5e-2), "bf16 instance norm mismatch"

    print("KERNEL_OK")
</pallas_src>

<mosaic_0001>
module attributes {stable_mosaic.version = 11 : i64} {
  func.func @kernel(%arg0: i32, %arg1: memref<4x128xf32, #tpu.memory_space<vmem>>, %arg2: memref<1x128xf32, #tpu.memory_space<vmem>>, %arg3: memref<1x128xf32, #tpu.memory_space<vmem>>, %arg4: memref<4x128xf32, #tpu.memory_space<vmem>>) attributes {dimension_semantics = [#tpu.dimension_semantics<arbitrary>], iteration_bounds = array<i64: 1>, scalar_prefetch = 0 : i64, scratch_operands = 0 : i64, tpu.core_type = #tpu.core_type<tc>, window_params = [{pipeline_mode = #tpu.pipeline_mode<synchronous>, transform_indices = @transform_0, window_bounds = array<i64: 4, 128>}, {pipeline_mode = #tpu.pipeline_mode<synchronous>, transform_indices = @transform_1, window_bounds = array<i64: 1, 128>}, {pipeline_mode = #tpu.pipeline_mode<synchronous>, transform_indices = @transform_2, window_bounds = array<i64: 1, 128>}, {pipeline_mode = #tpu.pipeline_mode<synchronous>, transform_indices = @transform_3, window_bounds = array<i64: 4, 128>}]} {
    %c0 = arith.constant 0 : index
    %c0_0 = arith.constant 0 : index
    %0 = vector.load %arg1[%c0, %c0_0] : memref<4x128xf32, #tpu.memory_space<vmem>>, vector<4x128xf32>
    %cst = arith.constant dense<0.000000e+00> : vector<128xf32>
    %1 = vector.multi_reduction <add>, %0, %cst [0] : vector<4x128xf32> to vector<128xf32>
    %2 = vector.shape_cast %1 : vector<128xf32> to vector<1x128xf32>
    %3 = arith.mulf %0, %0 : vector<4x128xf32>
    %cst_1 = arith.constant dense<0.000000e+00> : vector<128xf32>
    %4 = vector.multi_reduction <add>, %3, %cst_1 [0] : vector<4x128xf32> to vector<128xf32>
    %5 = vector.shape_cast %4 : vector<128xf32> to vector<1x128xf32>
    %c32_i32 = arith.constant 32 : i32
    %6 = tpu.dynamic_rotate %2 by %c32_i32 dim 1 : vector<1x128xf32>, i32 -> vector<1x128xf32>
    %7 = arith.addf %2, %6 : vector<1x128xf32>
    %c64_i32 = arith.constant 64 : i32
    %8 = tpu.dynamic_rotate %7 by %c64_i32 dim 1 : vector<1x128xf32>, i32 -> vector<1x128xf32>
    %9 = arith.addf %7, %8 : vector<1x128xf32>
    %c32_i32_2 = arith.constant 32 : i32
    %10 = tpu.dynamic_rotate %5 by %c32_i32_2 dim 1 : vector<1x128xf32>, i32 -> vector<1x128xf32>
    %11 = arith.addf %5, %10 : vector<1x128xf32>
    %c64_i32_3 = arith.constant 64 : i32
    %12 = tpu.dynamic_rotate %11 by %c64_i32_3 dim 1 : vector<1x128xf32>, i32 -> vector<1x128xf32>
    %13 = arith.addf %11, %12 : vector<1x128xf32>
    %cst_4 = arith.constant 6.250000e-02 : f32
    %14 = vector.broadcast %cst_4 : f32 to vector<1x128xf32>
    %15 = arith.mulf %9, %14 : vector<1x128xf32>
    %cst_5 = arith.constant 6.250000e-02 : f32
    %16 = vector.broadcast %cst_5 : f32 to vector<1x128xf32>
    %17 = arith.mulf %13, %16 : vector<1x128xf32>
    %18 = arith.mulf %15, %15 : vector<1x128xf32>
    %19 = arith.subf %17, %18 : vector<1x128xf32>
    %cst_6 = arith.constant 0.000000e+00 : f32
    %20 = vector.broadcast %cst_6 : f32 to vector<1x128xf32>
    %21 = arith.maximumf %19, %20 : vector<1x128xf32>
    %cst_7 = arith.constant 9.99999974E-6 : f32
    %22 = vector.broadcast %cst_7 : f32 to vector<1x128xf32>
    %23 = arith.addf %21, %22 : vector<1x128xf32>
    %24 = math.rsqrt %23 : vector<1x128xf32>
    %c0_8 = arith.constant 0 : index
    %c0_9 = arith.constant 0 : index
    %25 = vector.load %arg2[%c0_8, %c0_9] : memref<1x128xf32, #tpu.memory_space<vmem>>, vector<1x128xf32>
    %26 = arith.mulf %24, %25 : vector<1x128xf32>
    %c0_10 = arith.constant 0 : index
    %c0_11 = arith.constant 0 : index
    %27 = vector.load %arg3[%c0_10, %c0_11] : memref<1x128xf32, #tpu.memory_space<vmem>>, vector<1x128xf32>
    %28 = arith.mulf %15, %26 : vector<1x128xf32>
    %29 = arith.subf %27, %28 : vector<1x128xf32>
    %30 = vector.broadcast %26 : vector<1x128xf32> to vector<4x128xf32>
    %31 = arith.mulf %0, %30 : vector<4x128xf32>
    %32 = vector.broadcast %29 : vector<1x128xf32> to vector<4x128xf32>
    %33 = arith.addf %31, %32 : vector<4x128xf32>
    %c0_12 = arith.constant 0 : index
    %c0_13 = arith.constant 0 : index
    %34 = vector.load %arg4[%c0_12, %c0_13] : memref<4x128xf32, #tpu.memory_space<vmem>>, vector<4x128xf32>
    tpu.vector_store %arg4[%c0_12, %c0_13], %33 {strides = array<i32>} : memref<4x128xf32, #tpu.memory_space<vmem>>, vector<4x128xf32>,
    return
  }
  func.func @transform_0(%arg0: i32) -> (i32, i32) {
    %c0_i32 = arith.constant 0 : i32
    %c0_i32_0 = arith.constant 0 : i32
    %c0_i32_1 = arith.constant 0 : i32
    return %c0_i32, %c0_i32_0 : i32, i32
  }
  func.func @transform_1(%arg0: i32) -> (i32, i32) {
    %c0_i32 = arith.constant 0 : i32
    %c0_i32_0 = arith.constant 0 : i32
    %c0_i32_1 = arith.constant 0 : i32
    return %c0_i32, %c0_i32_0 : i32, i32
  }
  func.func @transform_2(%arg0: i32) -> (i32, i32) {
    %c0_i32 = arith.constant 0 : i32
    %c0_i32_0 = arith.constant 0 : i32
    %c0_i32_1 = arith.constant 0 : i32
    return %c0_i32, %c0_i32_0 : i32, i32
  }
  func.func @transform_3(%arg0: i32) -> (i32, i32) {
    %c0_i32 = arith.constant 0 : i32
    %c0_i32_0 = arith.constant 0 : i32
    %c0_i32_1 = arith.constant 0 : i32
    return %c0_i32, %c0_i32_0 : i32, i32
  }
}

</mosaic_0001>

<llo_original>
// kernel: tpu_custom_call.1
$region0: #{tpu_custom_call.1}
  #allocation0 [shape = 'u32[]', space=smem, size = 0x4, offset = 0x4, fixed_abs, tag = 'smem constant byte address 0x4 - core index']
  #allocation1 [shape = 'u32[144,128]{1,0:T(1,128)}', space=vmem, size = 0x12000, scoped, tag = 'internal scratch']
  %s0 = inlined_call_operand.hbm [shape: f32[4,128], index: 0, kind: input, shape index: {}]
  %s1 = inlined_call_operand.vmem [shape: f32[1,128], index: 1, kind: input, shape index: {}]
  %s2 = inlined_call_operand.vmem [shape: f32[1,128], index: 2, kind: input, shape index: {}]
  %s3 = inlined_call_operand.hbm [shape: f32[4,128], index: 3, kind: output, shape index: {}]
  %s4 = sld [smem:[#allocation0]]
  $region26: #{tpu_custom_call.1} parent=0
    _
  %s6 = ssub.s32 1, %s4
  %s7 = scalar_select 0, %s6, %s4
  $region1: #{tpu_custom_call.1} parent=0
    #allocation2 [shape = 'u8[2048]{0}', space=vmem, size = 0x800, scoped, tag = 'input window, operand 0, single buffered']
    #allocation3 [shape = 's32[1]{0}', space=sflag, size = 0x4, scoped, tag = 'scoped memory for tpu_custom_call.1']
    #allocation4 [shape = 's32[1]{0}', space=sflag, size = 0x4, scoped, tag = 'scoped memory for tpu_custom_call.1']
    #allocation5 [shape = 'u8[2048]{0}', space=vmem, size = 0x800, scoped, tag = 'output window, operand 0, single buffered']
    %8 = vsyncpa [#allocation3], 0
    %9 = vsyncpa [#allocation4], 0
    // Predicated region
    $region2: #{tpu_custom_call.1} parent=1 // pred_check
      _
    $region3: #{tpu_custom_call.1} parent=1 // pred_check_branch
      %11 = sbr.rel (0) target = $region5
    $region4: #{tpu_custom_call.1} parent=1 // pred_region
      %s13 = ssub.s32 64, 64
      %14 = vsyncadd [#allocation3], %s13
      %s16 = sshll.u32 [#allocation2], 4
      %s17 = int_to_ptr.vmem [resolvable:$true] %s16
      %19 = dma.hbm_to_vmem [thread:$0]  %s0, 64, %s17, [#allocation3]
    $region5: #{tpu_custom_call.1} parent=1 // pred_fallthru
      _
    // Predicated region
    $region6: #{tpu_custom_call.1} parent=1 // pred_check
      _
    $region7: #{tpu_custom_call.1} parent=1 // pred_check_branch
      %21 = sbr.rel (0) target = $region9
    $region8: #{tpu_custom_call.1} parent=1 // pred_region
      _
    $region9: #{tpu_custom_call.1} parent=1 // pred_fallthru
      _
    // Predicated region
    $region10: #{tpu_custom_call.1} parent=1 // pred_check
      _
    $region11: #{tpu_custom_call.1} parent=1 // pred_check_branch
      %23 = sbr.rel (0) target = $region13
    $region12: #{tpu_custom_call.1} parent=1 // pred_region
      _
    $region13: #{tpu_custom_call.1} parent=1 // pred_fallthru
      _
    // Predicated region
    $region14: #{tpu_custom_call.1} parent=1 // pred_check
      _
    $region15: #{tpu_custom_call.1} parent=1 // pred_check_branch
      %25 = sbr.rel (0) target = $region17
    $region16: #{tpu_custom_call.1} parent=1 // pred_region
      %26 = dma.done [#allocation3], 64
    $region17: #{tpu_custom_call.1} parent=1 // pred_fallthru
      _
    %v27 = vld [vmem:[#allocation2] sm:$0xf]
    %vm28 = vcmask 1043456
    %v29 = vsel %vm28, %v27, 0.0
    %v30 = vrot.slane %v29, 4
    %v31 = vadd.f32 %v29, %v30
    %v32 = vrot.slane %v31, 2
    %v33 = vadd.f32 %v31, %v32
    %v34 = vrot.slane %v33, 1
    %v35 = vadd.f32 %v33, %v34
    %v36 = vmul.f32 %v27, %v27
    %v37 = vsel %vm28, %v36, 0.0
    %v38 = vrot.slane %v37, 4
    %v39 = vadd.f32 %v37, %v38
    %v40 = vrot.slane %v39, 2
    %v41 = vadd.f32 %v39, %v40
    %v42 = vrot.slane %v41, 1
    %v43 = vadd.f32 %v41, %v42
    %44 = vrot.lane.b32.xlu0 %v35, 32
    %v45 = vpop.permute.xlu0 %44
    %v46 = vadd.f32 %v35, %v45
    %47 = vrot.lane.b32.xlu0 %v46, 64
    %v48 = vpop.permute.xlu0 %47
    %v49 = vadd.f32 %v46, %v48
    %50 = vrot.lane.b32.xlu0 %v43, 32
    %v51 = vpop.permute.xlu0 %50
    %v52 = vadd.f32 %v43, %v51
    %53 = vrot.lane.b32.xlu0 %v52, 64
    %v54 = vpop.permute.xlu0 %53
    %v55 = vadd.f32 %v52, %v54
    %v56 = vmul.f32 %v49, 0.0625
    %v57 = vmul.f32 %v55, 0.0625
    %v58 = vmul.f32 %v56, %v56
    %v59 = vsub.f32 %v57, %v58
    %v60 = vmax.f32 %v59, 0.0
    %v61 = vadd.f32 %v60, 1e-05
    %v62 = vrsqrt.pop %v61
    %v63 = vld [vmem:[%s1] sm:$0x1]
    %v64 = vmul.f32 %v62, %v63
    %v65 = vld [vmem:[%s2] sm:$0x1]
    %v66 = vmul.f32 %v56, %v64
    %v67 = vsub.f32 %v65, %v66
    %v68 = vlaneseq
    %v69 = vshrl.u32 %v68, 7
    %v70 = vsub.s32 0, %v69
    %v71 = vrot.slane %v64, %v70
    %v72 = vmul.f32 %v27, %v71
    %v74 = vlaneseq
    %v75 = vshrl.u32 %v74, 7
    %v76 = vsub.s32 0, %v75
    %v77 = vrot.slane %v67, %v76
    %v79 = vadd.f32 %v72, %v77
    %80 = vst [vmem:[#allocation5] sm:$0xf] %v79
    // Predicated region
    $region18: #{tpu_custom_call.1} parent=1 // pred_check
      _
    $region19: #{tpu_custom_call.1} parent=1 // pred_check_branch
      %82 = sbr.rel (0) target = $region21
    $region20: #{tpu_custom_call.1} parent=1 // pred_region
      %s84 = ssub.s32 64, 64
      %85 = vsyncadd [#allocation4], %s84
      %s87 = sshll.u32 [#allocation5], 4
      %s88 = int_to_ptr.vmem [resolvable:$true] %s87
      %90 = dma.vmem_to_hbm [thread:$0]  %s88, 64, %s3, [#allocation4]
    $region21: #{tpu_custom_call.1} parent=1 // pred_fallthru
      _
    // Predicated region
    $region22: #{tpu_custom_call.1} parent=1 // pred_check
      _
    $region23: #{tpu_custom_call.1} parent=1 // pred_check_branch
      %92 = sbr.rel (0) target = $region25
    $region24: #{tpu_custom_call.1} parent=1 // pred_region
      %93 = dma.done [#allocation4], 64
    $region25: #{tpu_custom_call.1} parent=1 // pred_fallthru
      _
    %94 = vsyncpa [#allocation3], 1
    %95 = vsyncpa [#allocation4], 1

</llo_original>
